<compile_context>
chip_gen: v7x
topology: tpu7x:2x2x1
jax: 0.10.0
libtpu: 0.0.40
codegen_flags: <defaults>
</compile_context>

<pallas_src>
import numpy as np
import jax
import jax.numpy as jnp
from jax.experimental import pallas as pl
from jax.experimental.pallas import tpu as pltpu


def _hbm_copy_kernel(x_hbm, o_hbm, sem):
    # Single full-tensor HBM -> HBM DMA (no VMEM staging, no grid).
    cp = pltpu.make_async_copy(x_hbm, o_hbm, sem)
    cp.start()
    cp.wait()


def null_unet_identity_pallas(x):
    """Identity realized as one HBM->HBM DMA Pallas kernel (fresh output buffer).

    Used when a materialized copy of the activation is explicitly wanted; the
    module forward itself short-circuits (see null_unet_forward).
    """
    return pl.pallas_call(
        _hbm_copy_kernel,
        out_shape=jax.ShapeDtypeStruct(x.shape, x.dtype),
        in_specs=[pl.BlockSpec(memory_space=pl.ANY)],
        out_specs=pl.BlockSpec(memory_space=pl.ANY),
        scratch_shapes=[pltpu.SemaphoreType.DMA],
    )(x)


def null_unet_forward(x, *args, **kwargs):
    """NullUnet.forward: identity. Extra args/kwargs are ignored, as in PyTorch.

    Pure identity => return x directly (no HBM read/write, no kernel launch).
    """
    return x


class NullUnet:
    """JAX mirror of the PyTorch NullUnet module."""

    def __init__(self, *args, **kwargs):
        self.lowres_cond = False
        self.dummy_parameter = jnp.zeros((1,), jnp.float32)  # torch.tensor([0.0])

    def cast_model_parameters(self, *args, **kwargs):
        return self

    def __call__(self, x, *args, **kwargs):
        return null_unet_forward(x, *args, **kwargs)

    forward = __call__


if __name__ == "__main__":
    key = jax.random.PRNGKey(0)

    # Small 3D-UNet-style activation: (B, C, D, H, W)
    B, C, D, H, W = 2, 4, 16, 16, 16
    x = jax.random.normal(key, (B, C, D, H, W), jnp.float32)

    unet = NullUnet()
    # Module forward: zero-copy identity (extra args/kwargs accepted & ignored,
    # exactly like the PyTorch module).
    y = jax.block_until_ready(unet(x, None, cond_scale=1.0))
    assert y.shape == x.shape and y.dtype == x.dtype
    np.testing.assert_array_equal(np.asarray(y), np.asarray(x))

    # Pallas TPU path: identity as a single HBM->HBM DMA into a fresh buffer.
    y_pallas = jax.block_until_ready(null_unet_identity_pallas(x))
    assert y_pallas.shape == x.shape and y_pallas.dtype == x.dtype
    np.testing.assert_array_equal(np.asarray(y_pallas), np.asarray(x))

    # Non-tile-aligned shape + bf16: no padding / slicing needed with the DMA path.
    x2 = jax.random.normal(jax.random.PRNGKey(1), (2, 3, 10, 10, 10), jnp.bfloat16)
    y2 = jax.block_until_ready(null_unet_identity_pallas(x2))
    assert y2.shape == x2.shape and y2.dtype == x2.dtype
    np.testing.assert_array_equal(np.asarray(y2), np.asarray(x2))

    print("KERNEL_OK")
</pallas_src>

<mosaic_0001>
module attributes {stable_mosaic.version = 11 : i64} {
  func.func @_hbm_copy_kernel(%arg0: memref<2x4x16x16x16xf32, #tpu.memory_space<any>>, %arg1: memref<2x4x16x16x16xf32, #tpu.memory_space<any>>, %arg2: memref<!tpu.dma_semaphore, #tpu.memory_space<semaphore_mem>>) attributes {dimension_semantics = [], scalar_prefetch = 0 : i64, scratch_operands = 1 : i64, tpu.core_type = #tpu.core_type<tc>} {
    tpu.enqueue_dma source(%arg0 : memref<2x4x16x16x16xf32, #tpu.memory_space<any>>) target(%arg1 : memref<2x4x16x16x16xf32, #tpu.memory_space<any>>) target_semaphore(%arg2 : memref<!tpu.dma_semaphore, #tpu.memory_space<semaphore_mem>>)
    tpu.wait_dma2 semaphore(%arg2 : memref<!tpu.dma_semaphore, #tpu.memory_space<semaphore_mem>>) src(%arg0 : memref<2x4x16x16x16xf32, #tpu.memory_space<any>>) dst(%arg1 : memref<2x4x16x16x16xf32, #tpu.memory_space<any>>)
    return
  }
}

</mosaic_0001>

<llo_original>
// kernel: tpu_custom_call.1
$region0: #{tpu_custom_call.1}
  #allocation0 [shape = 'u32[]', space=smem, size = 0x4, offset = 0x4, fixed_abs, tag = 'smem constant byte address 0x4 - core index']
  #allocation1 [shape = 'u32[144,128]{1,0:T(1,128)}', space=vmem, size = 0x12000, scoped, tag = 'internal scratch']
  #allocation2 [shape = 's32[1]{0}', space=sflag, size = 0x4, scoped, tag = 'scratch operand']
  #allocation3 [shape = 's32[]', space=sflag, size = 0x4, offset = 0, fixed_abs, tag = 'sflag constant byte address 0x0 - dummy sync flag']
  #allocation4 [shape = 'u32[0]{0}', space=smem, size = 0, offset = 0, fixed_abs, tag = 'smem constant byte address 0x0 - null']
  %s0 = inlined_call_operand.hbm [shape: f32[2,4,16,16,16], index: 0, kind: input, shape index: {}]
  %s1 = inlined_call_operand.hbm [shape: f32[2,4,16,16,16], index: 1, kind: output, shape index: {}]
  %s2 = sld [smem:[#allocation0]]
  $region2: #{tpu_custom_call.1} parent=0
    _
  %s4 = ssub.s32 1, %s2
  %s5 = scalar_select 0, %s4, %s2
  %s7 = sshll.u32 1, 14
  %s8 = sxor.u32 4294967295, %s7
  %s11 = sshll.u32 3, 24
  %s12 = sxor.u32 4294967295, %s11
  %s13 = sand.u32 0, %s12
  %s15 = sor.u32 %s13, 0
  %18 = dma.general %s0, 32768, %s1, [#allocation2], [#allocation3], [#allocation4], %s15, 0
  %s19 = smul.u32 2, 4
  %s20 = smul.u32 %s19, 16
  %s21 = smul.u32 %s20, 16
  %s22 = smul.u32 %s21, 1
  %s23 = sshll.u32 %s22, 4
  %24 = dma.done [#allocation2], %s23
  %25 = vsyncmov [#allocation2]
  %s26 = vpop.sfrf %25
  %p27 = scmp.eq.s32.totalorder %s26, 0
  %p28 = pneg %p27
  %30 = shalt.err (%p28)

</llo_original>
